<compile_context>
chip_gen: v7x
topology: tpu7x:2x2x1
jax: 0.10.0
libtpu: 0.0.40
codegen_flags: <defaults>
</compile_context>

<pallas_src>
import math

import jax
import jax.numpy as jnp
from jax.experimental import pallas as pl
from jax.experimental.pallas import tpu as pltpu


def _cdiv(a, b):
    return -(-a // b)


def _round_up(x, m):
    return _cdiv(x, m) * m


def _make_window(n_fft, kind):
    n = jnp.arange(n_fft, dtype=jnp.float32)
    if kind == "hann":        # torch.hann_window (periodic)
        return 0.5 * (1.0 - jnp.cos(2.0 * math.pi * n / n_fft))
    if kind == "hamming":     # torch.hamming_window (periodic)
        return 0.54 - 0.46 * jnp.cos(2.0 * math.pi * n / n_fft)
    if kind == "bartlett":    # torch.bartlett_window (periodic)
        return 1.0 - jnp.abs(2.0 * n / n_fft - 1.0)
    # TODO(synk): 'gaussian' window (reference calls an undefined helper).
    raise NotImplementedError(f"window kind {kind!r}")


def _stft_kernel(frames_ref, basis_ref, out_ref):
    # frames_ref: (1, n_fft, TF)  frame-transposed, lane-dense RHS slab
    # basis_ref:  (TB, n_fft)     window-folded rows: [w*cos ; -w*sin ; 0-pad]
    # out_ref:    (1, TB, TF)     transposed output: [re rows ; im rows]
    out_ref[0] = jnp.dot(
        basis_ref[...], frames_ref[0],
        preferred_element_type=jnp.float32).astype(out_ref.dtype)


class STFT:
    def __init__(self, n_fft=64, n_hop=16, center=False, kind_window="hann",
                 compute_dtype=jnp.float32, frames_per_tile=2048):
        self.n_fft = n_fft
        self.n_hop = n_hop
        self.center = center
        self.n_bins = n_fft // 2 + 1
        self.compute_dtype = jnp.dtype(compute_dtype)
        self.frames_per_tile = frames_per_tile
        self.window = _make_window(n_fft, kind_window)

        # ---- transposed, window-folded real-DFT basis ----------------------
        # rows [0, n_bins)        :  w[n] * cos(2*pi*n*k/n_fft)
        # rows [n_bins, 2*n_bins) : -w[n] * sin(2*pi*n*k/n_fft)
        # rows [2*n_bins, K_pad)  :  0 (sublane padding to the bin-tile size)
        k_rows = 2 * self.n_bins
        item = self.compute_dtype.itemsize
        # bin tile: multiple of 8 sublanes, basis block capped at ~4 MiB.
        tb_cap = max(8, (4 * 1024 * 1024 // max(1, n_fft * item)) // 8 * 8)
        self._tb = min(_round_up(k_rows, 8), tb_cap)
        self._n_btiles = _cdiv(k_rows, self._tb)
        self._k_pad = self._n_btiles * self._tb

        n = jnp.arange(n_fft, dtype=jnp.float32)[None, :]
        k = jnp.arange(self.n_bins, dtype=jnp.float32)[:, None]
        ang = 2.0 * math.pi * k * n / n_fft
        w = self.window[None, :]
        basis = jnp.zeros((self._k_pad, n_fft), jnp.float32)
        basis = basis.at[:self.n_bins, :].set(w * jnp.cos(ang))
        basis = basis.at[self.n_bins:k_rows, :].set(-(w * jnp.sin(ang)))
        # NOTE: bf16 (opt-in) also casts the audio frames → ~1e-2 rel. error;
        # keep the default f32 for exact torch semantics.
        self.basis = basis.astype(self.compute_dtype)

    # ------------------------------------------------------------------ call
    def __call__(self, x):
        """
        Input:  (nb_samples, nb_channels, nb_timesteps)  float32
        Output: (nb_samples, nb_channels, nb_bins, nb_frames, 2)
        """
        B, C, T = x.shape
        n_fft, hop = self.n_fft, self.n_hop
        x2 = x.astype(jnp.float32).reshape(B * C, T)

        if self.center:
            pad = n_fft // 2
            x2 = jnp.pad(x2, ((0, 0), (pad, pad)), mode="reflect")
            T = x2.shape[1]

        n_frames = (T - n_fft) // hop + 1
        assert n_frames >= 1, "signal too short for a single frame"
        return self._pallas_stft(x2, B, C, n_frames)

    # ---------------------------------------------------------------- pallas
    def _pallas_stft(self, x2, B, C, n_frames):
        n_fft, n_bins = self.n_fft, self.n_bins
        tb, k_pad, n_btiles = self._tb, self._k_pad, self._n_btiles
        BC = x2.shape[0]
        item = self.compute_dtype.itemsize

        # Tile sizing: tf multiple of 128 (lane-dense blocks), right-sized to
        # n_frames, double-buffered working set kept well inside the 32 MiB
        # scoped-VMEM default (v7x physical = 64 MiB).
        basis_blk = tb * n_fft * item

        def blocks_bytes(tf):
            return 2 * (n_fft * tf * item + basis_blk + tb * tf * 4)

        tf = max(128, (min(self.frames_per_tile, _round_up(n_frames, 128))
                       // 128) * 128)
        while tf > 128 and blocks_bytes(tf) > 24 * 1024 * 1024:
            tf -= 128
        n_tiles = _cdiv(n_frames, tf)
        if BC == 1 and n_tiles == 1 and n_frames > 128:
            n_tiles = 2            # keep >=2 parallel grid units (2-TC chips)
        tf = min(tf, _round_up(_cdiv(n_frames, n_tiles), 128))
        n_tiles = _cdiv(n_frames, tf)
        nf_pad = n_tiles * tf

        frames_t = self._build_frames_t(x2, nf_pad)     # (BC, n_fft, nf_pad)

        out = pl.pallas_call(
            _stft_kernel,
            out_shape=jax.ShapeDtypeStruct((BC, k_pad, nf_pad), jnp.float32),
            grid=(BC, n_tiles, n_btiles),
            in_specs=[
                pl.BlockSpec((1, n_fft, tf), lambda b, t, n: (b, 0, t)),
                pl.BlockSpec((tb, n_fft), lambda b, t, n: (n, 0)),
            ],
            out_specs=pl.BlockSpec((1, tb, tf), lambda b, t, n: (b, n, t)),
            compiler_params=pltpu.CompilerParams(
                dimension_semantics=("parallel", "parallel", "parallel"),
                vmem_limit_bytes=32 * 1024 * 1024,
            ),
        )(frames_t, self.basis)

        # Epilogue: no 5-D transpose — strip padding and interleave the two
        # contiguous row blocks (re / im) into the torch layout.
        re = out[:, :n_bins, :n_frames]
        im = out[:, n_bins:2 * n_bins, :n_frames]
        res = jnp.stack([re, im], axis=-1)              # (BC, bins, frames, 2)
        return res.reshape(B, C, n_bins, n_frames, 2)

    # ------------------------------------------------------- frame transpose
    def _build_frames_t(self, x2, nf_pad):
        # frames_t[b, i, j] = x2[b, j*hop + i]  (zero past the signal end).
        # Materialised wrapper-side (one XLA pass writing ~n_fft/hop x the
        # audio bytes) so the kernel does zero data movement beyond the
        # pipelined operand DMAs.
        n_fft, hop = self.n_fft, self.n_hop
        BC, T = x2.shape
        need = (nf_pad - 1) * hop + n_fft
        if need > T:
            x2 = jnp.pad(x2, ((0, 0), (0, need - T)))
        if n_fft % hop == 0:
            # hop | n_fft: build from hop-sized chunks with shifted slices
            # (reshape + one transpose + contiguous copies, no gather).
            r = n_fft // hop
            n_chunks = nf_pad + r - 1                    # == need // hop
            chunks_t = x2[:, :n_chunks * hop].reshape(BC, n_chunks, hop)
            chunks_t = chunks_t.transpose(0, 2, 1)       # (BC, hop, n_chunks)
            frames_t = jnp.concatenate(
                [chunks_t[:, :, s:s + nf_pad] for s in range(r)], axis=1)
        else:
            idx = (jnp.arange(n_fft)[:, None]
                   + hop * jnp.arange(nf_pad)[None, :])  # (n_fft, nf_pad)
            frames_t = jnp.take(x2, idx, axis=1)
        return frames_t.astype(self.compute_dtype)


def _reference_stft(x, window, n_fft, hop):
    """Pure-JAX reference (same math, no Pallas) for verification."""
    B, C, T = x.shape
    n_frames = (T - n_fft) // hop + 1
    n_bins = n_fft // 2 + 1
    x2 = x.reshape(B * C, T).astype(jnp.float32)
    idx = jnp.arange(n_frames)[:, None] * hop + jnp.arange(n_fft)[None, :]
    frames = x2[:, idx] * window[None, None, :]
    n = jnp.arange(n_fft, dtype=jnp.float32)[:, None]
    k = jnp.arange(n_bins, dtype=jnp.float32)[None, :]
    ang = 2.0 * math.pi * n * k / n_fft
    re = jnp.einsum("bfn,nk->bfk", frames, jnp.cos(ang))
    im = jnp.einsum("bfn,nk->bfk", frames, -jnp.sin(ang))
    re = re.reshape(B, C, n_frames, n_bins).transpose(0, 1, 3, 2)
    im = im.reshape(B, C, n_frames, n_bins).transpose(0, 1, 3, 2)
    return jnp.stack([re, im], axis=-1)


if __name__ == "__main__":
    key = jax.random.PRNGKey(0)
    B, C, T = 2, 2, 256
    n_fft, n_hop = 64, 16
    x = jax.random.normal(key, (B, C, T), dtype=jnp.float32)

    expect_shape = (B, C, n_fft // 2 + 1, (T - n_fft) // n_hop + 1, 2)

    # f32 path (exact torch semantics)
    stft = STFT(n_fft=n_fft, n_hop=n_hop, center=False, kind_window="hann")
    out = jax.block_until_ready(stft(x))
    ref = _reference_stft(x, stft.window, n_fft, n_hop)
    assert out.shape == expect_shape, out.shape
    assert jnp.allclose(out, ref, atol=1e-3, rtol=1e-3)

    # bf16 MXU path (opt-in): f32 accumulation, looser tolerance.
    stft_bf16 = STFT(n_fft=n_fft, n_hop=n_hop, center=False,
                     kind_window="hann", compute_dtype=jnp.bfloat16)
    out_bf16 = jax.block_until_ready(stft_bf16(x))
    assert out_bf16.shape == expect_shape, out_bf16.shape
    assert jnp.allclose(out_bf16, ref, atol=1e-1, rtol=1e-1)

    print("KERNEL_OK")
</pallas_src>

<mosaic_0001>
module attributes {stable_mosaic.version = 11 : i64} {
  func.func @_stft_kernel(%arg0: i32, %arg1: i32, %arg2: i32, %arg3: memref<1x64x128xf32, #tpu.memory_space<vmem>>, %arg4: memref<72x64xf32, #tpu.memory_space<vmem>>, %arg5: memref<1x72x128xf32, #tpu.memory_space<vmem>>) attributes {dimension_semantics = [#tpu.dimension_semantics<parallel>, #tpu.dimension_semantics<parallel>, #tpu.dimension_semantics<parallel>], iteration_bounds = array<i64: 4, 1, 1>, scalar_prefetch = 0 : i64, scratch_operands = 0 : i64, tpu.core_type = #tpu.core_type<tc>, window_params = [{transform_indices = @transform_0, window_bounds = array<i64: 1, 64, 128>}, {transform_indices = @transform_1, window_bounds = array<i64: 72, 64>}, {transform_indices = @transform_2, window_bounds = array<i64: 1, 72, 128>}]} {
    %c0 = arith.constant 0 : index
    %c0_0 = arith.constant 0 : index
    %0 = vector.load %arg4[%c0, %c0_0] : memref<72x64xf32, #tpu.memory_space<vmem>>, vector<72x64xf32>
    %c0_1 = arith.constant 0 : index
    %c0_2 = arith.constant 0 : index
    %c0_3 = arith.constant 0 : index
    %1 = vector.load %arg3[%c0_1, %c0_2, %c0_3] : memref<1x64x128xf32, #tpu.memory_space<vmem>>, vector<1x64x128xf32>
    %2 = vector.shape_cast %1 : vector<1x64x128xf32> to vector<64x128xf32>
    %cst = arith.constant dense<0.000000e+00> : vector<72x128xf32>
    %3 = tpu.matmul %0, %2, %cst {dimension_numbers = #tpu.dot_dimension_numbers<[1], [0], [0], [1], [0, 0, 1, 1], [], []>} : vector<72x64xf32>, vector<64x128xf32>, vector<72x128xf32> -> vector<72x128xf32>
    %c0_4 = arith.constant 0 : index
    %c0_5 = arith.constant 0 : index
    %c0_6 = arith.constant 0 : index
    %4 = vector.load %arg5[%c0_4, %c0_5, %c0_6] : memref<1x72x128xf32, #tpu.memory_space<vmem>>, vector<1x72x128xf32>
    %5 = vector.shape_cast %4 : vector<1x72x128xf32> to vector<72x128xf32>
    %6 = vector.shape_cast %3 : vector<72x128xf32> to vector<1x72x128xf32>
    tpu.vector_store %arg5[%c0_4, %c0_5, %c0_6], %6 {strides = array<i32>} : memref<1x72x128xf32, #tpu.memory_space<vmem>>, vector<1x72x128xf32>,
    return
  }
  func.func @transform_0(%arg0: i32, %arg1: i32, %arg2: i32) -> (i32, i32, i32) {
    %c0_i32 = arith.constant 0 : i32
    %c0_i32_0 = arith.constant 0 : i32
    return %arg0, %c0_i32, %arg1 : i32, i32, i32
  }
  func.func @transform_1(%arg0: i32, %arg1: i32, %arg2: i32) -> (i32, i32) {
    %c0_i32 = arith.constant 0 : i32
    %c0_i32_0 = arith.constant 0 : i32
    return %arg2, %c0_i32 : i32, i32
  }
  func.func @transform_2(%arg0: i32, %arg1: i32, %arg2: i32) -> (i32, i32, i32) {
    %c0_i32 = arith.constant 0 : i32
    return %arg0, %arg2, %arg1 : i32, i32, i32
  }
}

</mosaic_0001>

<llo_original>
// kernel: tpu_custom_call.1
$region0: #{tpu_custom_call.1}
  #allocation0 [shape = 'u32[]', space=smem, size = 0x4, offset = 0x4, fixed_abs, tag = 'smem constant byte address 0x4 - core index']
  #allocation1 [shape = 'u32[144,128]{1,0:T(1,128)}', space=vmem, size = 0x12000, scoped, tag = 'internal scratch']
  %s0 = inlined_call_operand.hbm [shape: f32[4,64,128], index: 0, kind: input, shape index: {}]
  %s1 = inlined_call_operand.vmem [shape: f32[72,64], index: 1, kind: input, shape index: {}]
  %s2 = inlined_call_operand.hbm [shape: f32[4,72,128], index: 2, kind: output, shape index: {}]
  %s3 = sld [smem:[#allocation0]]
  $region45: #{tpu_custom_call.1} parent=0
    _
  %s5 = ssub.s32 1, %s3
  %s6 = scalar_select 0, %s5, %s3
  $region1: #{tpu_custom_call.1} parent=0
    #allocation2 [shape = 'u8[65536]{0}', space=vmem, size = 0x10000, scoped, tag = 'input window, operand 0']
    #allocation3 [shape = 's32[2]{0}', space=sflag, size = 0x8, scoped, tag = 'scoped memory for tpu_custom_call.1']
    #allocation4 [shape = 's32[2]{0}', space=sflag, size = 0x8, scoped, tag = 'scoped memory for tpu_custom_call.1']
    #allocation5 [shape = 'u8[73728]{0}', space=vmem, size = 0x12000, scoped, tag = 'output window, operand 0']
    %7 = vsyncpa [#allocation3], 0
    %s8 = scalar_lea.sflag [#allocation3], 1
    %9 = vsyncpa %s8, 0
    %10 = vsyncpa [#allocation4], 0
    %s11 = scalar_lea.sflag [#allocation4], 1
    %12 = vsyncpa %s11, 0
    loop: start=0, step=1, limit=6
    $region2: #{tpu_custom_call.1} parent=1 // loop_pre_header
      _
    $region3: #{tpu_custom_call.1} parent=1 // loop_header
      %s14 = sphi 0, %s18
      %p15 = scmp.ge.s32.totalorder %s14, 6
      %s21 = sphi 0, %s40
      %s22 = sphi 0, %s36
      %s23 = sphi 0, %s32
      %s24 = sphi 0, %s21
      %s25 = sphi 0, %s22
      %s26 = sphi 0, %s23
      %s27 = sphi 0, %s24
      %s28 = sphi 0, %s25
      %s29 = sphi 0, %s26
      %s45 = sphi 0, %s47
      %s48 = sphi 0, %s45
      %s49 = sphi 0, %s48
      %s65 = sphi 0, %s49
      %s71 = sphi 0, %s73
      %s74 = sphi 0, %s71
      %s75 = sphi 0, %s74
      %s91 = sphi 0, %s75
      %s101 = sphi 0, %s103
      %s104 = sphi 0, %s101
      %s105 = sphi 0, %s104
      %s121 = sphi 0, %s105
    $region4: #{tpu_custom_call.1} parent=1 // loop_header_branch
      %17 = sbr.rel (%p15) target = $region8
    $region5: #{tpu_custom_call.1} parent=1 // loop_body
      %s19 = ssub.s32 %s14, 1
      %s20 = ssub.s32 %s14, 2
      %s30 = sadd.s32 1, %s23
      %p31 = scmp.ge.s32.totalorder %s30, 1
      %s32 = scalar_select %p31, 0, %s30
      %s33 = sadd.s32 1, %s22
      %s34 = scalar_select %p31, %s33, %s22
      %p35 = scmp.ge.s32.totalorder %s34, 1
      %s36 = scalar_select %p35, 0, %s34
      %s37 = sadd.s32 1, %s21
      %s38 = scalar_select %p35, %s37, %s21
      %p39 = scmp.ge.s32.totalorder %s38, 4
      %s40 = scalar_select %p39, 0, %s38
      %s41 = ssub.s32 %s21, %s40
      %s42 = ssub.s32 %s22, %s36
      %s43 = sor.u32 %s41, %s42
      %p44 = scmp.eq.s32.totalorder %s43, 0
      %s46 = sadd.s32 %s45, 1
      %s47 = scalar_select %p44, %s45, %s46
      %p50 = pneg %p44
      %p51 = scmp.eq.s32.totalorder %s14, 3
      %p52 = por %p50, %p51
      %p53 = scmp.ne.s32.totalorder %s45, %s48
      %p54 = scmp.eq.s32.totalorder %s14, 0
      %p55 = por %p53, %p54
      %p56 = scmp.ne.s32.totalorder %s45, %s48
      %p57 = scmp.eq.s32.totalorder %s19, 3
      %p58 = por %p56, %p57
      %p59 = scmp.ne.s32.totalorder %s48, %s49
      %p60 = scmp.eq.s32.totalorder %s19, 0
      %p61 = por %p59, %p60
      %p62 = scmp.ne.s32.totalorder %s48, %s49
      %p63 = scmp.eq.s32.totalorder %s20, 3
      %p64 = por %p62, %p63
      %p66 = scmp.ne.s32.totalorder %s49, %s65
      %p67 = scmp.eq.s32.totalorder %s20, 0
      %p68 = por %p66, %p67
      %s69 = ssub.s32 %s23, %s32
      %p70 = scmp.eq.s32.totalorder %s69, 0
      %s72 = sadd.s32 %s71, 1
      %s73 = scalar_select %p70, %s71, %s72
      %p76 = pneg %p70
      %p77 = scmp.eq.s32.totalorder %s14, 3
      %p78 = por %p76, %p77
      %p79 = scmp.ne.s32.totalorder %s71, %s74
      %p80 = scmp.eq.s32.totalorder %s14, 0
      %p81 = por %p79, %p80
      %p82 = scmp.ne.s32.totalorder %s71, %s74
      %p83 = scmp.eq.s32.totalorder %s19, 3
      %p84 = por %p82, %p83
      %p85 = scmp.ne.s32.totalorder %s74, %s75
      %p86 = scmp.eq.s32.totalorder %s19, 0
      %p87 = por %p85, %p86
      %p88 = scmp.ne.s32.totalorder %s74, %s75
      %p89 = scmp.eq.s32.totalorder %s20, 3
      %p90 = por %p88, %p89
      %p92 = scmp.ne.s32.totalorder %s75, %s91
      %p93 = scmp.eq.s32.totalorder %s20, 0
      %p94 = por %p92, %p93
      %s95 = ssub.s32 %s21, %s40
      %s96 = ssub.s32 %s23, %s32
      %s97 = sor.u32 %s95, %s96
      %s98 = ssub.s32 %s22, %s36
      %s99 = sor.u32 %s97, %s98
      %p100 = scmp.eq.s32.totalorder %s99, 0
      %s102 = sadd.s32 %s101, 1
      %s103 = scalar_select %p100, %s101, %s102
      %p106 = pneg %p100
      %p107 = scmp.eq.s32.totalorder %s14, 3
      %p108 = por %p106, %p107
      %p109 = scmp.ne.s32.totalorder %s101, %s104
      %p110 = scmp.eq.s32.totalorder %s14, 0
      %p111 = por %p109, %p110
      %p112 = scmp.ne.s32.totalorder %s101, %s104
      %p113 = scmp.eq.s32.totalorder %s19, 3
      %p114 = por %p112, %p113
      %p115 = scmp.ne.s32.totalorder %s104, %s105
      %p116 = scmp.eq.s32.totalorder %s19, 0
      %p117 = por %p115, %p116
      %p118 = scmp.ne.s32.totalorder %s104, %s105
      %p119 = scmp.eq.s32.totalorder %s20, 3
      %p120 = por %p118, %p119
      %p122 = scmp.ne.s32.totalorder %s105, %s121
      %p123 = scmp.eq.s32.totalorder %s20, 0
      %p124 = por %p122, %p123
      %p125 = scmp.le.s32.totalorder 1, %s14
      %p126 = scmp.lt.s32.totalorder %s14, 5
      %p127 = pnand %p125, %p126
      %p128 = pneg %p127
      // Predicated region
      $region9: #{tpu_custom_call.1} parent=5 // pred_check
        _
      $region10: #{tpu_custom_call.1} parent=5 // pred_check_branch
        %130 = sbr.rel (%p127) target = $region12
      $region11: #{tpu_custom_call.1} parent=5 // pred_region
        %s131 = ssub.s32 %s14, 1
        // Predicated region
        $region13: #{tpu_custom_call.1} parent=11 // pred_check
          %p132 = pneg %p87
        $region14: #{tpu_custom_call.1} parent=11 // pred_check_branch
          %134 = sbr.rel (%p132) target = $region16
        $region15: #{tpu_custom_call.1} parent=11 // pred_region
          %s135 = smul.u32 9, %s26
          %p136 = scmp.lt.s32.totalorder %s135, 8
          %s137 = scalar_select %p136, %s135, 8
          %s138 = smul.addr %s137, 8
          %s139 = scalar_lea.vmem %s1, %s138
          %s140 = smul.u32 9, %s26
        $region16: #{tpu_custom_call.1} parent=11 // pred_fallthru
          _
      $region12: #{tpu_custom_call.1} parent=5 // pred_fallthru
        _
      %p141 = scmp.lt.s32.totalorder %s14, 4
      // Predicated region
      $region17: #{tpu_custom_call.1} parent=5 // pred_check
        %p142 = pneg %p141
      $region18: #{tpu_custom_call.1} parent=5 // pred_check_branch
        %144 = sbr.rel (%p142) target = $region20
      $region19: #{tpu_custom_call.1} parent=5 // pred_region
        // Predicated region
        $region21: #{tpu_custom_call.1} parent=19 // pred_check
          %p145 = pneg %p55
        $region22: #{tpu_custom_call.1} parent=19 // pred_check_branch
          %147 = sbr.rel (%p145) target = $region24
        $region23: #{tpu_custom_call.1} parent=19 // pred_region
          %s148 = sand.u32 %s45, 1
          %s149 = scalar_lea.sflag [#allocation3], %s148
          %s150 = sand.u32 %s45, 1
          %s151 = smul.addr %s150, 64
          %s152 = scalar_lea.vmem [#allocation2], %s151
          %s154 = ssub.s32 1024, 1024
          %155 = vsyncadd %s149, %s154
          %s156 = smul.addr %s21, 8
          %s157 = sadd.s32 %s22, %s156
          %s158 = smul.addr %s157, 128
          %s159 = scalar_lea.hbm %s0, %s158
          %s160 = sshll.u32 %s152, 4
          %s161 = int_to_ptr.vmem [resolvable:$true] %s160
          %166 = dma.hbm_to_vmem [thread:$0]  %s159, 1024, %s161, %s149, 128, 128, 8
        $region24: #{tpu_custom_call.1} parent=19 // pred_fallthru
          _
      $region20: #{tpu_custom_call.1} parent=5 // pred_fallthru
        _
      %p167 = scmp.le.s32.totalorder 1, %s14
      %p168 = scmp.lt.s32.totalorder %s14, 5
      %p169 = pnand %p167, %p168
      %p170 = pneg %p169
      // Predicated region
      $region25: #{tpu_custom_call.1} parent=5 // pred_check
        _
      $region26: #{tpu_custom_call.1} parent=5 // pred_check_branch
        %172 = sbr.rel (%p169) target = $region28
      $region27: #{tpu_custom_call.1} parent=5 // pred_region
        %s173 = ssub.s32 %s14, 1
        %s174 = sand.u32 %s48, 1
        %s175 = scalar_lea.sflag [#allocation3], %s174
        %s176 = sand.u32 %s48, 1
        %s177 = smul.addr %s176, 64
        %s178 = scalar_lea.vmem [#allocation2], %s177
        // Predicated region
        $region29: #{tpu_custom_call.1} parent=27 // pred_check
          %p179 = pneg %p61
        $region30: #{tpu_custom_call.1} parent=27 // pred_check_branch
          %181 = sbr.rel (%p179) target = $region32
        $region31: #{tpu_custom_call.1} parent=27 // pred_region
          %182 = dma.done %s175, 1024
        $region32: #{tpu_custom_call.1} parent=27 // pred_fallthru
          _
        %s183 = sand.u32 %s48, 1
        %s184 = scalar_lea.sflag [#allocation3], %s183
        %s185 = sand.u32 %s48, 1
        %s186 = smul.addr %s185, 64
        %s187 = scalar_lea.vmem [#allocation2], %s186
        %p188 = pneg %p61
        %p189 = pneg %p58
        %s190 = smul.u32 9, %s26
        %p191 = scmp.lt.s32.totalorder %s190, 8
        %s192 = scalar_select %p191, %s190, 8
        %s193 = smul.addr %s192, 8
        %s194 = scalar_lea.vmem %s1, %s193
        %p195 = pneg %p87
        %p196 = pneg %p84
        %p197 = pneg %p117
        %p198 = pneg %p114
        %s199 = sand.u32 %s104, 1
        %s200 = scalar_lea.sflag [#allocation4], %s199
        %s201 = sand.u32 %s104, 1
        %s202 = smul.addr %s201, 72
        %s203 = scalar_lea.vmem [#allocation5], %s202
        %s204 = smul.u32 9, %s26
        %p205 = scmp.lt.s32.totalorder %s204, 8
        %s206 = scalar_select %p205, %s204, 8
        %s207 = smul.addr %s206, 8
        %s208 = scalar_lea.vmem %s1, %s207
        %s209 = smul.u32 9, %s26
        %s210 = smul.u32 9, %s26
        %v211 = vld [vmem:[%s208] sm:$0xff]
        %v212 = vld [vmem:[%s208 + $0x8] sm:$0xff]
        %v213 = vld [vmem:[%s208 + $0x10] sm:$0xff]
        %v214 = vld [vmem:[%s208 + $0x18] sm:$0xff]
        %v215 = vld [vmem:[%s208 + $0x20] sm:$0xff]
        %v216 = vld [vmem:[%s208 + $0x28] sm:$0xff]
        %v217 = vld [vmem:[%s208 + $0x30] sm:$0xff]
        %v218 = vld [vmem:[%s208 + $0x38] sm:$0xff]
        %v219 = vld [vmem:[%s208 + $0x40] sm:$0xff]
        %v220 = vld [vmem:[%s178] sm:$0xff]
        %v221 = vld [vmem:[%s178 + $0x8] sm:$0xff]
        %v222 = vld [vmem:[%s178 + $0x10] sm:$0xff]
        %v223 = vld [vmem:[%s178 + $0x18] sm:$0xff]
        %v224 = vld [vmem:[%s178 + $0x20] sm:$0xff]
        %v225 = vld [vmem:[%s178 + $0x28] sm:$0xff]
        %v226 = vld [vmem:[%s178 + $0x30] sm:$0xff]
        %v227 = vld [vmem:[%s178 + $0x38] sm:$0xff]
        %vm228 = vcmask 523264
        %v230 = vsel %vm228, %v211, 0
        %v233 = vsel %vm228, %v212, 0
        %v236 = vsel %vm228, %v213, 0
        %v239 = vsel %vm228, %v214, 0
        %v242 = vsel %vm228, %v215, 0
        %v245 = vsel %vm228, %v216, 0
        %v248 = vsel %vm228, %v217, 0
        %v251 = vsel %vm228, %v218, 0
        %v254 = vsel %vm228, %v219, 0
        %256 = vmatprep.subr.mxu0 0.0
        %257 = vmatpush1.msra.mxu0 %v220
        %258 = vmatprep.subr.mxu0 0.0
        %259 = vmatpush1.msra.mxu0 %v221
        %260 = vmatprep.subr.mxu0 0.0
        %261 = vmatpush1.msra.mxu0 %v222
        %262 = vmatprep.subr.mxu0 0.0
        %263 = vmatpush1.msra.mxu0 %v223
        %264 = vmatprep.subr.mxu0 0.0
        %265 = vmatpush1.msra.mxu0 %v224
        %266 = vmatprep.subr.mxu0 0.0
        %267 = vmatpush1.msra.mxu0 %v225
        %268 = vmatprep.subr.mxu0 0.0
        %269 = vmatpush1.msra.mxu0 %v226
        %270 = vmatprep.subr.mxu0 0.0
        %271 = vmatpush1.msra.mxu0 %v227
        %272 = vmatprep.subr.mxu0 0.0
        %273 = vmatpush1.msra.mxu0 0.0
        %274 = vmatprep.subr.mxu0 0.0
        %275 = vmatpush1.msra.mxu0 0.0
        %276 = vmatprep.subr.mxu0 0.0
        %277 = vmatpush1.msra.mxu0 0.0
        %278 = vmatprep.subr.mxu0 0.0
        %279 = vmatpush1.msra.mxu0 0.0
        %280 = vmatprep.subr.mxu0 0.0
        %281 = vmatpush1.msra.mxu0 0.0
        %282 = vmatprep.subr.mxu0 0.0
        %283 = vmatpush1.msra.mxu0 0.0
        %284 = vmatprep.subr.mxu0 0.0
        %285 = vmatpush1.msra.mxu0 0.0
        %286 = vmatprep.subr.mxu0 0.0
        %287 = vmatpush1.msra.mxu0 0.0
        %288 = vmatprep.subr.mxu0 0.0
        %289 = vmatpush1.msra.mxu0 0.0
        %290 = vmatprep.subr.mxu0 0.0
        %291 = vmatpush1.msra.mxu0 0.0
        %292 = vmatprep.subr.mxu0 0.0
        %293 = vmatpush1.msra.mxu0 0.0
        %294 = vmatprep.subr.mxu0 0.0
        %295 = vmatpush1.msra.mxu0 0.0
        %296 = vmatprep.subr.mxu0 0.0
        %297 = vmatpush1.msra.mxu0 0.0
        %298 = vmatprep.subr.mxu0 0.0
        %299 = vmatpush1.msra.mxu0 0.0
        %300 = vmatprep.subr.mxu0 0.0
        %301 = vmatpush1.msra.mxu0 0.0
        %302 = vmatprep.subr.mxu0 0.0
        %303 = vmatpush1.msra.mxu0 0.0
        %304 = vmatprep.subr.mxu0 0.0
        %305 = vmatpush1.msra.mxu0 0.0
        %306 = vmatprep.subr.mxu0 0.0
        %307 = vmatpush1.msra.mxu0 0.0
        %308 = vmatprep.subr.mxu0 0.0
        %309 = vmatpush1.msra.mxu0 0.0
        %310 = vmatprep.subr.mxu0 0.0
        %311 = vmatpush1.msra.mxu0 0.0
        %312 = vmatprep.subr.mxu0 0.0
        %313 = vmatpush1.msra.mxu0 0.0
        %314 = vmatprep.subr.mxu0 0.0
        %315 = vmatpush1.msra.mxu0 0.0
        %316 = vmatprep.subr.mxu0 0.0
        %317 = vmatpush1.msra.mxu0 0.0
        %318 = vmatprep.subr.mxu0 0.0
        %319 = vmatpush1.msra.mxu0 0.0
        %320 = vmatprep.mubr.f32.mxu0 0.0
        %321 = vmatmul.mubr.f32.gmra.mrb[0].mxu0 %v230
        %v322 = vpop.f32.mrb[0].mxu0
        %v323 = vadd.f32 0.0, %v322
        %v324 = vpop.f32.mrb[0].mxu0
        %325 = vmatprep.mubr.f32.mxu0 0.0
        %326 = vmatmul.mubr.f32.gmra.mrb[0].mxu0 %v233
        %v327 = vpop.f32.mrb[0].mxu0
        %v328 = vadd.f32 0.0, %v327
        %v329 = vpop.f32.mrb[0].mxu0
        %330 = vmatprep.mubr.f32.mxu0 0.0
        %331 = vmatmul.mubr.f32.gmra.mrb[0].mxu0 %v236
        %v332 = vpop.f32.mrb[0].mxu0
        %v333 = vadd.f32 0.0, %v332
        %v334 = vpop.f32.mrb[0].mxu0
        %335 = vmatprep.mubr.f32.mxu0 0.0
        %336 = vmatmul.mubr.f32.gmra.mrb[0].mxu0 %v239
        %v337 = vpop.f32.mrb[0].mxu0
        %v338 = vadd.f32 0.0, %v337
        %v339 = vpop.f32.mrb[0].mxu0
        %340 = vmatprep.mubr.f32.mxu0 0.0
        %341 = vmatmul.mubr.f32.gmra.mrb[0].mxu0 %v242
        %v342 = vpop.f32.mrb[0].mxu0
        %v343 = vadd.f32 0.0, %v342
        %v344 = vpop.f32.mrb[0].mxu0
        %345 = vmatprep.mubr.f32.mxu0 0.0
        %346 = vmatmul.mubr.f32.gmra.mrb[0].mxu0 %v245
        %v347 = vpop.f32.mrb[0].mxu0
        %v348 = vadd.f32 0.0, %v347
        %v349 = vpop.f32.mrb[0].mxu0
        %350 = vmatprep.mubr.f32.mxu0 0.0
        %351 = vmatmul.mubr.f32.gmra.mrb[0].mxu0 %v248
        %v352 = vpop.f32.mrb[0].mxu0
        %v353 = vadd.f32 0.0, %v352
        %v354 = vpop.f32.mrb[0].mxu0
        %355 = vmatprep.mubr.f32.mxu0 0.0
        %356 = vmatmul.mubr.f32.gmra.mrb[0].mxu0 %v251
        %v357 = vpop.f32.mrb[0].mxu0
        %v358 = vadd.f32 0.0, %v357
        %v359 = vpop.f32.mrb[0].mxu0
        %360 = vmatprep.mubr.f32.mxu0 0.0
        %361 = vmatmul.mubr.f32.gmra.mrb[0].mxu0 %v254
        %v362 = vpop.f32.mrb[0].mxu0
        %v363 = vadd.f32 0.0, %v362
        %v364 = vpop.f32.mrb[0].mxu0
        %365 = vdwg.mxu0
        %366 = vst [vmem:[%s203] sm:$0xff] %v323
        %367 = vst [vmem:[%s203 + $0x8] sm:$0xff] %v328
        %368 = vst [vmem:[%s203 + $0x10] sm:$0xff] %v333
        %369 = vst [vmem:[%s203 + $0x18] sm:$0xff] %v338
        %370 = vst [vmem:[%s203 + $0x20] sm:$0xff] %v343
        %371 = vst [vmem:[%s203 + $0x28] sm:$0xff] %v348
        %372 = vst [vmem:[%s203 + $0x30] sm:$0xff] %v353
        %373 = vst [vmem:[%s203 + $0x38] sm:$0xff] %v358
        %374 = vst [vmem:[%s203 + $0x40] sm:$0xff] %v363
        %s375 = sand.u32 %s104, 1
        %s376 = scalar_lea.sflag [#allocation4], %s375
        %s377 = sand.u32 %s104, 1
        %s378 = smul.addr %s377, 72
        %s379 = scalar_lea.vmem [#allocation5], %s378
        // Predicated region
        $region33: #{tpu_custom_call.1} parent=27 // pred_check
          %p380 = pneg %p114
        $region34: #{tpu_custom_call.1} parent=27 // pred_check_branch
          %382 = sbr.rel (%p380) target = $region36
        $region35: #{tpu_custom_call.1} parent=27 // pred_region
          %s383 = smul.u32 9, %s26
          %s385 = ssub.s32 1152, 1152
          %386 = vsyncadd %s376, %s385
          %s387 = sadd.s32 %s25, %s383
          %s388 = smul.addr %s24, 9
          %s389 = sadd.s32 %s387, %s388
          %s390 = smul.addr %s389, 128
          %s391 = scalar_lea.hbm %s2, %s390
          %s392 = sshll.u32 %s379, 4
          %s393 = int_to_ptr.vmem [resolvable:$true] %s392
          %398 = dma.vmem_to_hbm [thread:$0]  %s393, 1152, %s391, %s376, 128, 128, 8
        $region36: #{tpu_custom_call.1} parent=27 // pred_fallthru
          _
      $region28: #{tpu_custom_call.1} parent=5 // pred_fallthru
        _
      %p399 = scmp.le.s32.totalorder 2, %s14
      // Predicated region
      $region37: #{tpu_custom_call.1} parent=5 // pred_check
        %p400 = pneg %p399
      $region38: #{tpu_custom_call.1} parent=5 // pred_check_branch
        %402 = sbr.rel (%p400) target = $region40
      $region39: #{tpu_custom_call.1} parent=5 // pred_region
        %s403 = ssub.s32 %s14, 2
        // Predicated region
        $region41: #{tpu_custom_call.1} parent=39 // pred_check
          %p404 = pneg %p120
        $region42: #{tpu_custom_call.1} parent=39 // pred_check_branch
          %406 = sbr.rel (%p404) target = $region44
        $region43: #{tpu_custom_call.1} parent=39 // pred_region
          %s407 = sand.u32 %s105, 1
          %s408 = scalar_lea.sflag [#allocation4], %s407
          %s409 = sand.u32 %s105, 1
          %s410 = smul.addr %s409, 72
          %s411 = scalar_lea.vmem [#allocation5], %s410
          %412 = dma.done %s408, 1152
        $region44: #{tpu_custom_call.1} parent=39 // pred_fallthru
          _
      $region40: #{tpu_custom_call.1} parent=5 // pred_fallthru
        _
    $region6: #{tpu_custom_call.1} parent=1 // loop_footer
      %s18 = sadd.s32 1, %s14
    $region7: #{tpu_custom_call.1} parent=1 // loop_footer_branch
      %13 = sbr.rel target = $region3
    $region8: #{tpu_custom_call.1} parent=1 // loop_exit
      _
    %413 = vsyncpa [#allocation3], 1
    %s414 = scalar_lea.sflag [#allocation3], 1
    %415 = vsyncpa %s414, 1
    %416 = vsyncpa [#allocation4], 1
    %s417 = scalar_lea.sflag [#allocation4], 1
    %418 = vsyncpa %s417, 1

</llo_original>
